<compile_context>
chip_gen: v7x
topology: tpu7x:2x2x1
jax: 0.10.0
libtpu: 0.0.40
codegen_flags: <defaults>
</compile_context>

<pallas_src>
import functools

import jax
import jax.numpy as jnp
import numpy as np
from jax import lax
from jax.experimental import pallas as pl
from jax.experimental.pallas import tpu as pltpu

# Leaves headroom on v7x (64 MiB physical VMEM); well above the 16/32 MiB
# default scoped limit on v5e/v6e so large tiles are not rejected.
_VMEM_LIMIT_BYTES = 48 * 1024 * 1024

# Fully unroll the selection loop up to this capacity (gives the LLO scheduler
# visibility across iterations); fall back to a rolled fori_loop beyond it.
_UNROLL_CAPACITY = 16


def _pick_tile(dim: int, preferred: int, align: int) -> int:
    """Largest multiple of `align` <= `preferred` that evenly divides `dim`."""
    if dim <= preferred:
        return dim
    t = (preferred // align) * align
    while t >= align:
        if dim % t == 0:
            return t
        t -= align
    # TODO(synk): for large prime-ish dims, pad T/D instead of falling back to
    # a single (possibly VMEM-heavy) block on this axis.
    return dim


# --------------------------------------------------------------------------
# Kernel 1: tiled linear layer (logits = x @ W^T + b) on the MXU.
# --------------------------------------------------------------------------
def _linear_kernel(x_ref, w_ref, b_ref, logits_ref, acc_ref):
    k = pl.program_id(1)

    @pl.when(k == 0)
    def _init():
        acc_ref[...] = jnp.zeros_like(acc_ref)

    # MXU matmul in the input's native dtype (bf16 or f32), f32 accumulation.
    acc_ref[...] += jnp.dot(x_ref[...], w_ref[...],
                            preferred_element_type=jnp.float32)

    @pl.when(k == pl.num_programs(1) - 1)
    def _finalize():
        logits_ref[...] = (acc_ref[...] + b_ref[...]).astype(logits_ref.dtype)


# --------------------------------------------------------------------------
# Kernel 2: softmax over tokens + expert-choice top-k, in (E, T) layout.
# --------------------------------------------------------------------------
def _softmax_topk_kernel(logits_ref, probs_ref, ep_ref, ei_ref,
                         *, expert_capacity: int):
    logits = logits_ref[...].astype(jnp.float32)      # (T, E)
    lt = logits.T                                     # (E, T): tokens on lanes

    # Softmax over tokens == full-width lane reduction per expert row.
    m = jnp.max(lt, axis=-1, keepdims=True)           # (E, 1)
    e = jnp.exp(lt - m)                               # (E, T)  (EUP)
    denom = jnp.sum(e, axis=-1, keepdims=True)        # (E, 1)
    # EUP approximate reciprocal + one Newton step (denom is only (E, 1), so
    # the refinement is essentially free and keeps f32 accuracy).
    r = pl.reciprocal(denom, approx=True)
    r = r * (2.0 - denom * r)
    probs_et = e * r                                  # (E, T)
    probs_ref[...] = probs_et.T                       # (T, E) output

    E, T = probs_et.shape
    token_ids = lax.broadcasted_iota(jnp.int32, (E, T), 1)
    slot_ids = lax.broadcasted_iota(jnp.int32, (E, expert_capacity), 1)

    # Iterative per-expert argmax; all reductions lane-dense on (E, T).
    # Results placed with a cheap vectorized slot-mask (avoids per-iteration
    # dynamic_update_slice / dynamic lane-offset stores).  Min-index tie-break
    # matches torch.topk / lax.top_k ordering.
    # TODO(synk): for very large expert_capacity / token counts, a streaming
    # per-row top-k (bounded heap over token tiles) would beat this
    # O(capacity * T) loop.
    def body(c, carry):
        p, ep, ei = carry
        mx = jnp.max(p, axis=-1, keepdims=True)                   # (E, 1)
        is_max = p == mx
        idx = jnp.min(jnp.where(is_max, token_ids, T),
                      axis=-1, keepdims=True)                     # (E, 1) i32
        sel = slot_ids == c
        ep = jnp.where(sel, mx, ep)
        ei = jnp.where(sel, idx, ei)
        p = jnp.where(token_ids == idx, -jnp.inf, p)              # remove pick
        return p, ep, ei

    ep0 = jnp.zeros((E, expert_capacity), jnp.float32)
    ei0 = jnp.zeros((E, expert_capacity), jnp.int32)
    unroll = expert_capacity <= _UNROLL_CAPACITY
    _, ep, ei = lax.fori_loop(0, expert_capacity, body, (probs_et, ep0, ei0),
                              unroll=unroll)

    ep_ref[...] = ep                                  # (E, cap) directly
    ei_ref[...] = ei


# --------------------------------------------------------------------------
# Wrapper
# --------------------------------------------------------------------------
def expert_choice_router(x, weight, bias, k: int, expert_capacity: int):
    """x: (T, D); weight: (E, D) [torch nn.Linear layout]; bias: (E,).

    Returns (logits, probs, expert_probs, expert_indices) matching the PyTorch
    forward.  `k` is accepted for API parity but (as in the reference forward)
    unused: top-k is taken with k=expert_capacity.
    expert_indices is int32 (torch emits int64); cast host-side if needed.
    """
    del k  # unused in the reference forward
    T, D = x.shape
    E = weight.shape[0]
    if expert_capacity > T:
        # torch.topk(k=expert_capacity, dim=0) would error in this case too.
        raise ValueError("expert_capacity must be <= num_tokens")

    # x flows through in its native dtype (bf16 feeds the MXU directly);
    # only the small (D, E) weight is cast to match it.
    w_t = weight.T.astype(x.dtype)                    # (D, E)
    b2 = bias.reshape(1, E).astype(jnp.float32)       # (1, E)

    tile_t = _pick_tile(T, 1024, 8)
    tile_d = _pick_tile(D, 512, 128)

    logits = pl.pallas_call(
        _linear_kernel,
        out_shape=jax.ShapeDtypeStruct((T, E), jnp.float32),
        grid_spec=pltpu.PrefetchScalarGridSpec(
            num_scalar_prefetch=0,
            grid=(T // tile_t, D // tile_d),
            in_specs=[
                pl.BlockSpec((tile_t, tile_d), lambda i, kk: (i, kk)),
                pl.BlockSpec((tile_d, E), lambda i, kk: (kk, 0)),
                pl.BlockSpec((1, E), lambda i, kk: (0, 0)),
            ],
            out_specs=pl.BlockSpec((tile_t, E), lambda i, kk: (i, 0)),
            scratch_shapes=[pltpu.VMEM((tile_t, E), jnp.float32)],
        ),
        compiler_params=pltpu.CompilerParams(
            dimension_semantics=("parallel", "arbitrary"),
            vmem_limit_bytes=_VMEM_LIMIT_BYTES),
    )(x, w_t, b2)

    kernel2 = functools.partial(_softmax_topk_kernel,
                                expert_capacity=expert_capacity)
    probs, expert_probs, expert_indices = pl.pallas_call(
        kernel2,
        out_shape=(
            jax.ShapeDtypeStruct((T, E), jnp.float32),
            jax.ShapeDtypeStruct((E, expert_capacity), jnp.float32),
            jax.ShapeDtypeStruct((E, expert_capacity), jnp.int32),
        ),
        in_specs=[pl.BlockSpec((T, E), lambda: (0, 0))],
        out_specs=(
            pl.BlockSpec((T, E), lambda: (0, 0)),
            pl.BlockSpec((E, expert_capacity), lambda: (0, 0)),
            pl.BlockSpec((E, expert_capacity), lambda: (0, 0)),
        ),
        compiler_params=pltpu.CompilerParams(
            vmem_limit_bytes=_VMEM_LIMIT_BYTES),
    )(logits)

    return logits, probs, expert_probs, expert_indices


if __name__ == "__main__":
    # Small, module-consistent shapes: num_tokens=16, d_model=32, num_experts=8
    T, D, E = 16, 32, 8
    k, expert_capacity = 2, 4

    key = jax.random.PRNGKey(0)
    kx, kw, kb = jax.random.split(key, 3)

    x = jax.random.normal(kx, (T, D), dtype=jnp.float32)
    # deterministic nn.Linear-style init: U(-1/sqrt(D), 1/sqrt(D))
    bound = 1.0 / (D ** 0.5)
    weight = jax.random.uniform(kw, (E, D), minval=-bound, maxval=bound,
                                dtype=jnp.float32)
    bias = jax.random.uniform(kb, (E,), minval=-bound, maxval=bound,
                              dtype=jnp.float32)

    logits, probs, expert_probs, expert_indices = expert_choice_router(
        x, weight, bias, k, expert_capacity)
    jax.block_until_ready((logits, probs, expert_probs, expert_indices))

    # ---- sanity check vs. host (numpy f32) reference ----
    xn = np.asarray(x, np.float32)
    wn = np.asarray(weight, np.float32)
    bn = np.asarray(bias, np.float32)
    ref_logits = xn @ wn.T + bn
    z = ref_logits - ref_logits.max(axis=0, keepdims=True)
    ez = np.exp(z)
    ref_probs = ez / ez.sum(axis=0, keepdims=True)
    # Value reference from numpy probs (tolerance), index/consistency reference
    # from the kernel's own probs (exact; avoids tie-flip flakiness between
    # MXU and numpy last-bit rounding).
    ref_vals_np, _ = lax.top_k(jnp.asarray(ref_probs).T, expert_capacity)
    self_vals, self_idx = lax.top_k(probs.T, expert_capacity)

    assert logits.shape == (T, E) and probs.shape == (T, E)
    assert expert_probs.shape == (E, expert_capacity)
    assert expert_indices.shape == (E, expert_capacity)
    assert jnp.allclose(logits, ref_logits, atol=1e-4, rtol=1e-4)
    assert jnp.allclose(probs, ref_probs, atol=1e-4, rtol=1e-4)
    assert jnp.allclose(expert_probs, ref_vals_np, atol=1e-4, rtol=1e-4)
    assert jnp.allclose(expert_probs, self_vals, atol=1e-6, rtol=1e-6)
    assert jnp.array_equal(expert_indices, self_idx.astype(jnp.int32))

    print("KERNEL_OK")
</pallas_src>

<mosaic_0001>
module attributes {stable_mosaic.version = 11 : i64} {
  func.func @_linear_kernel(%arg0: i32, %arg1: i32, %arg2: memref<16x32xf32, #tpu.memory_space<vmem>>, %arg3: memref<32x8xf32, #tpu.memory_space<vmem>>, %arg4: memref<1x8xf32, #tpu.memory_space<vmem>>, %arg5: memref<16x8xf32, #tpu.memory_space<vmem>>, %arg6: memref<16x8xf32, #tpu.memory_space<vmem>>) attributes {dimension_semantics = [#tpu.dimension_semantics<parallel>, #tpu.dimension_semantics<arbitrary>], iteration_bounds = array<i64: 1, 1>, scalar_prefetch = 0 : i64, scratch_operands = 1 : i64, tpu.core_type = #tpu.core_type<tc>, window_params = [{transform_indices = @transform_0, window_bounds = array<i64: 16, 32>}, {transform_indices = @transform_1, window_bounds = array<i64: 32, 8>}, {pipeline_mode = #tpu.pipeline_mode<synchronous>, transform_indices = @transform_2, window_bounds = array<i64: 1, 8>}, {transform_indices = @transform_3, window_bounds = array<i64: 16, 8>}]} {
    %c0_i32 = arith.constant 0 : i32
    %0 = arith.cmpi eq, %arg1, %c0_i32 : i32
    %1 = arith.extui %0 : i1 to i32
    %c0_i32_0 = arith.constant 0 : i32
    %2 = arith.cmpi ne, %1, %c0_i32_0 : i32
    scf.if %2 {
      %cst_10 = arith.constant 0.000000e+00 : f32
      %12 = vector.broadcast %cst_10 : f32 to vector<16x8xf32>
      %c0_11 = arith.constant 0 : index
      %c0_12 = arith.constant 0 : index
      %13 = vector.load %arg6[%c0_11, %c0_12] : memref<16x8xf32, #tpu.memory_space<vmem>>, vector<16x8xf32>
      tpu.vector_store %arg6[%c0_11, %c0_12], %12 {strides = array<i32>} : memref<16x8xf32, #tpu.memory_space<vmem>>, vector<16x8xf32>,
    } else {
    }
    %c0 = arith.constant 0 : index
    %c0_1 = arith.constant 0 : index
    %3 = vector.load %arg6[%c0, %c0_1] : memref<16x8xf32, #tpu.memory_space<vmem>>, vector<16x8xf32>
    %c0_2 = arith.constant 0 : index
    %c0_3 = arith.constant 0 : index
    %4 = vector.load %arg2[%c0_2, %c0_3] : memref<16x32xf32, #tpu.memory_space<vmem>>, vector<16x32xf32>
    %c0_4 = arith.constant 0 : index
    %c0_5 = arith.constant 0 : index
    %5 = vector.load %arg3[%c0_4, %c0_5] : memref<32x8xf32, #tpu.memory_space<vmem>>, vector<32x8xf32>
    %cst = arith.constant dense<0.000000e+00> : vector<16x8xf32>
    %6 = tpu.matmul %4, %5, %cst {dimension_numbers = #tpu.dot_dimension_numbers<[1], [0], [0], [1], [0, 0, 1, 1], [], []>} : vector<16x32xf32>, vector<32x8xf32>, vector<16x8xf32> -> vector<16x8xf32>
    %7 = arith.addf %3, %6 : vector<16x8xf32>
    %c0_6 = arith.constant 0 : index
    %c0_7 = arith.constant 0 : index
    %8 = vector.load %arg6[%c0_6, %c0_7] : memref<16x8xf32, #tpu.memory_space<vmem>>, vector<16x8xf32>
    tpu.vector_store %arg6[%c0_6, %c0_7], %7 {strides = array<i32>} : memref<16x8xf32, #tpu.memory_space<vmem>>, vector<16x8xf32>,
    %c0_i32_8 = arith.constant 0 : i32
    %9 = arith.cmpi eq, %arg1, %c0_i32_8 : i32
    %10 = arith.extui %9 : i1 to i32
    %c0_i32_9 = arith.constant 0 : i32
    %11 = arith.cmpi ne, %10, %c0_i32_9 : i32
    scf.if %11 {
      %c0_10 = arith.constant 0 : index
      %c0_11 = arith.constant 0 : index
      %12 = vector.load %arg6[%c0_10, %c0_11] : memref<16x8xf32, #tpu.memory_space<vmem>>, vector<16x8xf32>
      %c0_12 = arith.constant 0 : index
      %c0_13 = arith.constant 0 : index
      %13 = vector.load %arg4[%c0_12, %c0_13] : memref<1x8xf32, #tpu.memory_space<vmem>>, vector<1x8xf32>
      %14 = vector.broadcast %13 : vector<1x8xf32> to vector<16x8xf32>
      %15 = arith.addf %12, %14 : vector<16x8xf32>
      %c0_14 = arith.constant 0 : index
      %c0_15 = arith.constant 0 : index
      %16 = vector.load %arg5[%c0_14, %c0_15] : memref<16x8xf32, #tpu.memory_space<vmem>>, vector<16x8xf32>
      tpu.vector_store %arg5[%c0_14, %c0_15], %15 {strides = array<i32>} : memref<16x8xf32, #tpu.memory_space<vmem>>, vector<16x8xf32>,
    } else {
    }
    return
  }
  func.func @transform_0(%arg0: i32, %arg1: i32) -> (i32, i32) {
    %c0_i32 = arith.constant 0 : i32
    return %arg0, %arg1 : i32, i32
  }
  func.func @transform_1(%arg0: i32, %arg1: i32) -> (i32, i32) {
    %c0_i32 = arith.constant 0 : i32
    %c0_i32_0 = arith.constant 0 : i32
    return %arg1, %c0_i32 : i32, i32
  }
  func.func @transform_2(%arg0: i32, %arg1: i32) -> (i32, i32) {
    %c0_i32 = arith.constant 0 : i32
    %c0_i32_0 = arith.constant 0 : i32
    %c0_i32_1 = arith.constant 0 : i32
    return %c0_i32, %c0_i32_0 : i32, i32
  }
  func.func @transform_3(%arg0: i32, %arg1: i32) -> (i32, i32) {
    %c0_i32 = arith.constant 0 : i32
    %c0_i32_0 = arith.constant 0 : i32
    return %arg0, %c0_i32 : i32, i32
  }
}

</mosaic_0001>

<llo_original>
// kernel: tpu_custom_call.1
$region0: #{tpu_custom_call.1}
  #allocation0 [shape = 'u32[]', space=smem, size = 0x4, offset = 0x4, fixed_abs, tag = 'smem constant byte address 0x4 - core index']
  #allocation1 [shape = 'u32[144,128]{1,0:T(1,128)}', space=vmem, size = 0x12000, scoped, tag = 'internal scratch']
  #allocation2 [shape = 'f32[16,8]{1,0:T(8,128)}', space=vmem, size = 0x2000, scoped, tag = 'scratch operand']
  %s0 = inlined_call_operand.vmem [shape: f32[16,32], index: 0, kind: input, shape index: {}]
  %s1 = inlined_call_operand.vmem [shape: f32[32,8], index: 1, kind: input, shape index: {}]
  %s2 = inlined_call_operand.vmem [shape: f32[1,8], index: 2, kind: input, shape index: {}]
  %s3 = inlined_call_operand.vmem [shape: f32[16,8], index: 3, kind: output, shape index: {}]
  %s4 = sld [smem:[#allocation0]]
  $region30: #{tpu_custom_call.1} parent=0
    _
  %s6 = ssub.s32 1, %s4
  %s7 = scalar_select 0, %s6, %s4
  // Predicated region
  $region2: #{tpu_custom_call.1} parent=0 // pred_check
    _
  $region3: #{tpu_custom_call.1} parent=0 // pred_check_branch
    %9 = sbr.rel (0) target = $region5
  $region4: #{tpu_custom_call.1} parent=0 // pred_region
    _
  $region5: #{tpu_custom_call.1} parent=0 // pred_fallthru
    _
  // Predicated region
  $region6: #{tpu_custom_call.1} parent=0 // pred_check
    _
  $region7: #{tpu_custom_call.1} parent=0 // pred_check_branch
    %11 = sbr.rel (0) target = $region9
  $region8: #{tpu_custom_call.1} parent=0 // pred_region
    _
  $region9: #{tpu_custom_call.1} parent=0 // pred_fallthru
    _
  // Predicated region
  $region10: #{tpu_custom_call.1} parent=0 // pred_check
    _
  $region11: #{tpu_custom_call.1} parent=0 // pred_check_branch
    %13 = sbr.rel (0) target = $region13
  $region12: #{tpu_custom_call.1} parent=0 // pred_region
    _
  $region13: #{tpu_custom_call.1} parent=0 // pred_fallthru
    _
  %p14 = scmp.eq.s32.totalorder 0, 0
  // Predicated region
  $region14: #{tpu_custom_call.1} parent=0 // pred_check
    %p15 = pneg %p14
  $region15: #{tpu_custom_call.1} parent=0 // pred_check_branch
    %17 = sbr.rel (%p15) target = $region17
  $region16: #{tpu_custom_call.1} parent=0 // pred_region
    %vm18 = vcmask 64512
    %19 = vst.msk [vmem:[#allocation2] sm:$0xff] %vm18, 0.0
    %20 = vst.msk [vmem:[#allocation2 + $0x8] sm:$0xff] %vm18, 0.0
  $region17: #{tpu_custom_call.1} parent=0 // pred_fallthru
    _
  %v21 = vld [vmem:[#allocation2] sm:$0xff]
  %v22 = vld [vmem:[#allocation2 + $0x8] sm:$0xff]
  %v23 = vld [vmem:[%s0] sm:$0xff]
  %v24 = vld [vmem:[%s0 + $0x8] sm:$0xff]
  %v25 = vld [vmem:[%s1] sm:$0xff]
  %v26 = vld [vmem:[%s1 + $0x8] sm:$0xff]
  %v27 = vld [vmem:[%s1 + $0x10] sm:$0xff]
  %v28 = vld [vmem:[%s1 + $0x18] sm:$0xff]
  %vm29 = vcmask 261120
  %v31 = vsel %vm29, %v23, 0
  %v34 = vsel %vm29, %v24, 0
  %36 = vmatprep.subr.mxu0 0.0
  %37 = vmatpush1.msra.mxu0 %v25
  %38 = vmatprep.subr.mxu0 0.0
  %39 = vmatpush1.msra.mxu0 %v26
  %40 = vmatprep.subr.mxu0 0.0
  %41 = vmatpush1.msra.mxu0 %v27
  %42 = vmatprep.subr.mxu0 0.0
  %43 = vmatpush1.msra.mxu0 %v28
  %44 = vmatprep.subr.mxu0 0.0
  %45 = vmatpush1.msra.mxu0 0.0
  %46 = vmatprep.subr.mxu0 0.0
  %47 = vmatpush1.msra.mxu0 0.0
  %48 = vmatprep.subr.mxu0 0.0
  %49 = vmatpush1.msra.mxu0 0.0
  %50 = vmatprep.subr.mxu0 0.0
  %51 = vmatpush1.msra.mxu0 0.0
  %52 = vmatprep.subr.mxu0 0.0
  %53 = vmatpush1.msra.mxu0 0.0
  %54 = vmatprep.subr.mxu0 0.0
  %55 = vmatpush1.msra.mxu0 0.0
  %56 = vmatprep.subr.mxu0 0.0
  %57 = vmatpush1.msra.mxu0 0.0
  %58 = vmatprep.subr.mxu0 0.0
  %59 = vmatpush1.msra.mxu0 0.0
  %60 = vmatprep.subr.mxu0 0.0
  %61 = vmatpush1.msra.mxu0 0.0
  %62 = vmatprep.subr.mxu0 0.0
  %63 = vmatpush1.msra.mxu0 0.0
  %64 = vmatprep.subr.mxu0 0.0
  %65 = vmatpush1.msra.mxu0 0.0
  %66 = vmatprep.subr.mxu0 0.0
  %67 = vmatpush1.msra.mxu0 0.0
  %68 = vmatprep.subr.mxu0 0.0
  %69 = vmatpush1.msra.mxu0 0.0
  %70 = vmatprep.subr.mxu0 0.0
  %71 = vmatpush1.msra.mxu0 0.0
  %72 = vmatprep.subr.mxu0 0.0
  %73 = vmatpush1.msra.mxu0 0.0
  %74 = vmatprep.subr.mxu0 0.0
  %75 = vmatpush1.msra.mxu0 0.0
  %76 = vmatprep.subr.mxu0 0.0
  %77 = vmatpush1.msra.mxu0 0.0
  %78 = vmatprep.subr.mxu0 0.0
  %79 = vmatpush1.msra.mxu0 0.0
  %80 = vmatprep.subr.mxu0 0.0
  %81 = vmatpush1.msra.mxu0 0.0
  %82 = vmatprep.subr.mxu0 0.0
  %83 = vmatpush1.msra.mxu0 0.0
  %84 = vmatprep.subr.mxu0 0.0
  %85 = vmatpush1.msra.mxu0 0.0
  %86 = vmatprep.subr.mxu0 0.0
  %87 = vmatpush1.msra.mxu0 0.0
  %88 = vmatprep.subr.mxu0 0.0
  %89 = vmatpush1.msra.mxu0 0.0
  %90 = vmatprep.subr.mxu0 0.0
  %91 = vmatpush1.msra.mxu0 0.0
  %92 = vmatprep.subr.mxu0 0.0
  %93 = vmatpush1.msra.mxu0 0.0
  %94 = vmatprep.subr.mxu0 0.0
  %95 = vmatpush1.msra.mxu0 0.0
  %96 = vmatprep.subr.mxu0 0.0
  %97 = vmatpush1.msra.mxu0 0.0
  %98 = vmatprep.subr.mxu0 0.0
  %99 = vmatpush1.msra.mxu0 0.0
  %100 = vmatprep.mubr.f32.mxu0 0.0
  %101 = vmatmul.mubr.f32.gmra.mrb[0].mxu0 %v31
  %v102 = vpop.f32.mrb[0].mxu0
  %v103 = vadd.f32 0.0, %v102
  %v104 = vpop.f32.mrb[0].mxu0
  %105 = vmatprep.mubr.f32.mxu0 0.0
  %106 = vmatmul.mubr.f32.gmra.mrb[0].mxu0 %v34
  %v107 = vpop.f32.mrb[0].mxu0
  %v108 = vadd.f32 0.0, %v107
  %v109 = vpop.f32.mrb[0].mxu0
  %110 = vdwg.mxu0
  %v111 = vadd.f32 %v21, %v103
  %v112 = vadd.f32 %v22, %v108
  %vm113 = vcmask 64512
  %114 = vst.msk [vmem:[#allocation2] sm:$0xff] %vm113, %v111
  %115 = vst.msk [vmem:[#allocation2 + $0x8] sm:$0xff] %vm113, %v112
  // Predicated region
  $region18: #{tpu_custom_call.1} parent=0 // pred_check
    %p116 = pneg %p14
  $region19: #{tpu_custom_call.1} parent=0 // pred_check_branch
    %118 = sbr.rel (%p116) target = $region21
  $region20: #{tpu_custom_call.1} parent=0 // pred_region
    %v119 = vld [vmem:[#allocation2] sm:$0xff]
    %v120 = vld [vmem:[#allocation2 + $0x8] sm:$0xff]
    %v121 = vld [vmem:[%s2] sm:$0x1]
    %v123 = vlaneseq
    %v124 = vshrl.u32 %v123, 7
    %v125 = vsub.s32 0, %v124
    %v126 = vrot.slane %v121, %v125
    %v128 = vadd.f32 %v119, %v126
    %v129 = vadd.f32 %v120, %v126
    %130 = vst.msk [vmem:[%s3] sm:$0xff] %vm113, %v128
    %131 = vst.msk [vmem:[%s3 + $0x8] sm:$0xff] %vm113, %v129
  $region21: #{tpu_custom_call.1} parent=0 // pred_fallthru
    _
  // Predicated region
  $region22: #{tpu_custom_call.1} parent=0 // pred_check
    _
  $region23: #{tpu_custom_call.1} parent=0 // pred_check_branch
    %133 = sbr.rel (0) target = $region25
  $region24: #{tpu_custom_call.1} parent=0 // pred_region
    _
  $region25: #{tpu_custom_call.1} parent=0 // pred_fallthru
    _
  // Predicated region
  $region26: #{tpu_custom_call.1} parent=0 // pred_check
    _
  $region27: #{tpu_custom_call.1} parent=0 // pred_check_branch
    %135 = sbr.rel (0) target = $region29
  $region28: #{tpu_custom_call.1} parent=0 // pred_region
    _
  $region29: #{tpu_custom_call.1} parent=0 // pred_fallthru
    _

</llo_original>
